<compile_context>
chip_gen: v5e
topology: v5e:2x2
jax: 0.10.0
libtpu: 0.0.40
codegen_flags: <defaults>
</compile_context>

<pallas_src>
import math

import jax
import jax.numpy as jnp
from jax.experimental import pallas as pl
from jax.experimental.pallas import tpu as pltpu


# ----------------------------------------------------------------------------
# Setup-time glue: replicate the PyTorch __init__ positional buffer.
# ----------------------------------------------------------------------------
def build_pos_emb(dim: int, height: int, width: int) -> jnp.ndarray:
    """Returns the (H*W, dim) float32 positional table from the module."""
    assert dim % 4 == 0
    half_dim = dim // 2
    div_term = jnp.exp(
        jnp.arange(0.0, half_dim, 2.0) * -(math.log(10000.0) / half_dim)
    )  # (dim//4,)
    pos_w = jnp.arange(0.0, width)[:, None]   # (W, 1)
    pos_h = jnp.arange(0.0, height)[:, None]  # (H, 1)

    sin_w = jnp.sin(pos_w * div_term)  # (W, dim//4)
    cos_w = jnp.cos(pos_w * div_term)  # (W, dim//4)
    sin_h = jnp.sin(pos_h * div_term)  # (H, dim//4)
    cos_h = jnp.cos(pos_h * div_term)  # (H, dim//4)

    q = dim // 4
    pe = jnp.zeros((dim, height, width), dtype=jnp.float32)
    pe = pe.at[0:half_dim:2, :, :].set(
        jnp.broadcast_to(sin_w.T[:, None, :], (q, height, width)))
    pe = pe.at[1:half_dim:2, :, :].set(
        jnp.broadcast_to(cos_w.T[:, None, :], (q, height, width)))
    pe = pe.at[half_dim::2, :, :].set(
        jnp.broadcast_to(sin_h.T[:, :, None], (q, height, width)))
    pe = pe.at[half_dim + 1::2, :, :].set(
        jnp.broadcast_to(cos_h.T[:, :, None], (q, height, width)))

    # einops.rearrange(pe, 'c h w -> (h w) c')
    return jnp.transpose(pe, (1, 2, 0)).reshape(height * width, dim)


# ----------------------------------------------------------------------------
# Kernel 1: the tiny MLP on the positional table (runs once, not per batch).
# ----------------------------------------------------------------------------
def _mlp_kernel(pe_ref, w1_ref, b1_ref, w2_ref, b2_ref, out_ref):
    h = jnp.dot(pe_ref[...], w1_ref[...],
                preferred_element_type=jnp.float32) + b1_ref[...]
    h = h * jax.nn.sigmoid(h)  # SiLU
    out_ref[...] = (jnp.dot(h, w2_ref[...],
                            preferred_element_type=jnp.float32)
                    + b2_ref[...]).astype(out_ref.dtype)


def _pos_mlp(pos_emb, w1, b1, w2, b2):
    S, C = pos_emb.shape
    return pl.pallas_call(
        _mlp_kernel,
        out_shape=jax.ShapeDtypeStruct((S, C), jnp.float32),
        grid_spec=pltpu.PrefetchScalarGridSpec(
            num_scalar_prefetch=0,
            grid=(1,),
            in_specs=[
                pl.BlockSpec((S, C), lambda i: (0, 0)),   # pos_emb
                pl.BlockSpec((C, C), lambda i: (0, 0)),   # w1
                pl.BlockSpec((1, C), lambda i: (0, 0)),   # b1
                pl.BlockSpec((C, C), lambda i: (0, 0)),   # w2
                pl.BlockSpec((1, C), lambda i: (0, 0)),   # b2
            ],
            out_specs=pl.BlockSpec((S, C), lambda i: (0, 0)),
        ),
        compiler_params=pltpu.CompilerParams(
            dimension_semantics=("arbitrary",)),
    )(pos_emb.astype(jnp.float32), w1, b1.reshape(1, C), w2, b2.reshape(1, C))


# ----------------------------------------------------------------------------
# Kernel 2: lane-dense streaming broadcast-add over the flattened (B, S*C) slab.
# ----------------------------------------------------------------------------
def _add_kernel(pe_ref, x_ref, o_ref):
    # pe block is (1, tl), x/out blocks are (bt, tl): sublane broadcast add.
    o_ref[...] = (x_ref[...] + pe_ref[...]).astype(o_ref.dtype)


def _pick_tiles(B, L, itemsize, target_bytes=2 * 1024 * 1024):
    """Pick (row_tile, lane_tile) for the (B, L) broadcast-add.

    lane_tile is a multiple of 128 dividing L (unmasked vst) or the full L;
    row_tile is a multiple of 8 dividing B or the full B (Mosaic sublane rule).
    Blocks target ~target_bytes so per-grid-step overhead is amortized.
    """
    bt = 8 if (B % 8 == 0) else B
    if L % 128 != 0:
        tl = L
    else:
        max_cols = max(128, target_bytes // (bt * itemsize))
        if L <= max_cols:
            tl = L
        else:
            tl = 128
            d = 256
            while d <= max_cols:
                if L % d == 0:
                    tl = d
                d += 128
    # Grow the row tile back toward the target if the lane tile came out small.
    while (bt < B and B % (bt * 2) == 0
           and bt * 2 * tl * itemsize <= target_bytes):
        bt *= 2
    return bt, tl


def pos_embedding_2d(x, pos_emb, w1, b1, w2, b2):
    """x: (B, S, C); pos_emb: (S, C); w*: (C, C); b*: (C,). Returns (B, S, C)."""
    B, S, C = x.shape
    L = S * C

    # Stage 1: pe_mlp = MLP(pos_emb), computed exactly once.
    pe_mlp = _pos_mlp(pos_emb, w1, b1, w2, b2)          # (S, C) f32

    # Stage 2: flatten to a lane-dense slab and stream the broadcast add.
    x_flat = x.reshape(B, L)
    pe_flat = pe_mlp.reshape(1, L).astype(x.dtype)

    itemsize = jnp.dtype(x.dtype).itemsize
    bt, tl = _pick_tiles(B, L, itemsize)

    out_flat = pl.pallas_call(
        _add_kernel,
        out_shape=jax.ShapeDtypeStruct((B, L), x.dtype),
        grid_spec=pltpu.PrefetchScalarGridSpec(
            num_scalar_prefetch=0,
            grid=(B // bt, L // tl),
            in_specs=[
                pl.BlockSpec((1, tl), lambda i, j: (0, j)),    # pe (broadcast)
                pl.BlockSpec((bt, tl), lambda i, j: (i, j)),   # x
            ],
            out_specs=pl.BlockSpec((bt, tl), lambda i, j: (i, j)),
        ),
        compiler_params=pltpu.CompilerParams(
            dimension_semantics=("parallel", "parallel"),
            vmem_limit_bytes=32 * 1024 * 1024,
        ),
    )(pe_flat, x_flat)

    return out_flat.reshape(B, S, C)


# ----------------------------------------------------------------------------
# Reference + test.
# ----------------------------------------------------------------------------
def reference(x, pos_emb, w1, b1, w2, b2):
    h = pos_emb @ w1 + b1
    h = h * jax.nn.sigmoid(h)
    pe_mlp = h @ w2 + b2
    return x + pe_mlp[None]


if __name__ == "__main__":
    dim, height, width = 32, 8, 8
    batch = 2
    S = height * width

    key = jax.random.PRNGKey(0)
    kx, kw1, kb1, kw2, kb2 = jax.random.split(key, 5)

    # Deterministic synthetic parameters (PyTorch-Linear-style uniform init).
    bound = 1.0 / math.sqrt(dim)
    w1 = jax.random.uniform(kw1, (dim, dim), jnp.float32, -bound, bound)
    b1 = jax.random.uniform(kb1, (dim,), jnp.float32, -bound, bound)
    w2 = jax.random.uniform(kw2, (dim, dim), jnp.float32, -bound, bound)
    b2 = jax.random.uniform(kb2, (dim,), jnp.float32, -bound, bound)

    x = jax.random.normal(kx, (batch, S, dim), jnp.float32)
    pos_emb = build_pos_emb(dim, height, width)

    out = pos_embedding_2d(x, pos_emb, w1, b1, w2, b2)
    out = jax.block_until_ready(out)

    ref = reference(x, pos_emb, w1, b1, w2, b2)
    assert out.shape == (batch, S, dim)
    assert jnp.allclose(out, ref, atol=1e-5, rtol=1e-5)

    print("KERNEL_OK")
</pallas_src>

<mosaic_0001>
module attributes {stable_mosaic.version = 11 : i64} {
  func.func @_mlp_kernel(%arg0: i32, %arg1: memref<64x32xf32, #tpu.memory_space<vmem>>, %arg2: memref<32x32xf32, #tpu.memory_space<vmem>>, %arg3: memref<1x32xf32, #tpu.memory_space<vmem>>, %arg4: memref<32x32xf32, #tpu.memory_space<vmem>>, %arg5: memref<1x32xf32, #tpu.memory_space<vmem>>, %arg6: memref<64x32xf32, #tpu.memory_space<vmem>>) attributes {dimension_semantics = [#tpu.dimension_semantics<arbitrary>], iteration_bounds = array<i64: 1>, scalar_prefetch = 0 : i64, scratch_operands = 0 : i64, tpu.core_type = #tpu.core_type<tc>, window_params = [{pipeline_mode = #tpu.pipeline_mode<synchronous>, transform_indices = @transform_0, window_bounds = array<i64: 64, 32>}, {pipeline_mode = #tpu.pipeline_mode<synchronous>, transform_indices = @transform_1, window_bounds = array<i64: 32, 32>}, {pipeline_mode = #tpu.pipeline_mode<synchronous>, transform_indices = @transform_2, window_bounds = array<i64: 1, 32>}, {pipeline_mode = #tpu.pipeline_mode<synchronous>, transform_indices = @transform_3, window_bounds = array<i64: 32, 32>}, {pipeline_mode = #tpu.pipeline_mode<synchronous>, transform_indices = @transform_4, window_bounds = array<i64: 1, 32>}, {pipeline_mode = #tpu.pipeline_mode<synchronous>, transform_indices = @transform_5, window_bounds = array<i64: 64, 32>}]} {
    %c0 = arith.constant 0 : index
    %c0_0 = arith.constant 0 : index
    %0 = vector.load %arg1[%c0, %c0_0] : memref<64x32xf32, #tpu.memory_space<vmem>>, vector<64x32xf32>
    %c0_1 = arith.constant 0 : index
    %c0_2 = arith.constant 0 : index
    %1 = vector.load %arg2[%c0_1, %c0_2] : memref<32x32xf32, #tpu.memory_space<vmem>>, vector<32x32xf32>
    %cst = arith.constant dense<0.000000e+00> : vector<64x32xf32>
    %2 = tpu.matmul %0, %1, %cst {dimension_numbers = #tpu.dot_dimension_numbers<[1], [0], [0], [1], [0, 0, 1, 1], [], []>} : vector<64x32xf32>, vector<32x32xf32>, vector<64x32xf32> -> vector<64x32xf32>
    %c0_3 = arith.constant 0 : index
    %c0_4 = arith.constant 0 : index
    %3 = vector.load %arg3[%c0_3, %c0_4] : memref<1x32xf32, #tpu.memory_space<vmem>>, vector<1x32xf32>
    %4 = vector.broadcast %3 : vector<1x32xf32> to vector<64x32xf32>
    %5 = arith.addf %2, %4 : vector<64x32xf32>
    %6 = arith.negf %5 : vector<64x32xf32>
    %7 = math.exp %6 : vector<64x32xf32>
    %cst_5 = arith.constant 1.000000e+00 : f32
    %8 = vector.broadcast %cst_5 : f32 to vector<64x32xf32>
    %9 = arith.addf %8, %7 : vector<64x32xf32>
    %10 = arith.divf %8, %9 : vector<64x32xf32>
    %11 = arith.mulf %5, %10 : vector<64x32xf32>
    %c0_6 = arith.constant 0 : index
    %c0_7 = arith.constant 0 : index
    %12 = vector.load %arg4[%c0_6, %c0_7] : memref<32x32xf32, #tpu.memory_space<vmem>>, vector<32x32xf32>
    %cst_8 = arith.constant dense<0.000000e+00> : vector<64x32xf32>
    %13 = tpu.matmul %11, %12, %cst_8 {dimension_numbers = #tpu.dot_dimension_numbers<[1], [0], [0], [1], [0, 0, 1, 1], [], []>} : vector<64x32xf32>, vector<32x32xf32>, vector<64x32xf32> -> vector<64x32xf32>
    %c0_9 = arith.constant 0 : index
    %c0_10 = arith.constant 0 : index
    %14 = vector.load %arg5[%c0_9, %c0_10] : memref<1x32xf32, #tpu.memory_space<vmem>>, vector<1x32xf32>
    %15 = vector.broadcast %14 : vector<1x32xf32> to vector<64x32xf32>
    %16 = arith.addf %13, %15 : vector<64x32xf32>
    %c0_11 = arith.constant 0 : index
    %c0_12 = arith.constant 0 : index
    %17 = vector.load %arg6[%c0_11, %c0_12] : memref<64x32xf32, #tpu.memory_space<vmem>>, vector<64x32xf32>
    tpu.vector_store %arg6[%c0_11, %c0_12], %16 {strides = array<i32>} : memref<64x32xf32, #tpu.memory_space<vmem>>, vector<64x32xf32>,
    return
  }
  func.func @transform_0(%arg0: i32) -> (i32, i32) {
    %c0_i32 = arith.constant 0 : i32
    %c0_i32_0 = arith.constant 0 : i32
    %c0_i32_1 = arith.constant 0 : i32
    return %c0_i32, %c0_i32_0 : i32, i32
  }
  func.func @transform_1(%arg0: i32) -> (i32, i32) {
    %c0_i32 = arith.constant 0 : i32
    %c0_i32_0 = arith.constant 0 : i32
    %c0_i32_1 = arith.constant 0 : i32
    return %c0_i32, %c0_i32_0 : i32, i32
  }
  func.func @transform_2(%arg0: i32) -> (i32, i32) {
    %c0_i32 = arith.constant 0 : i32
    %c0_i32_0 = arith.constant 0 : i32
    %c0_i32_1 = arith.constant 0 : i32
    return %c0_i32, %c0_i32_0 : i32, i32
  }
  func.func @transform_3(%arg0: i32) -> (i32, i32) {
    %c0_i32 = arith.constant 0 : i32
    %c0_i32_0 = arith.constant 0 : i32
    %c0_i32_1 = arith.constant 0 : i32
    return %c0_i32, %c0_i32_0 : i32, i32
  }
  func.func @transform_4(%arg0: i32) -> (i32, i32) {
    %c0_i32 = arith.constant 0 : i32
    %c0_i32_0 = arith.constant 0 : i32
    %c0_i32_1 = arith.constant 0 : i32
    return %c0_i32, %c0_i32_0 : i32, i32
  }
  func.func @transform_5(%arg0: i32) -> (i32, i32) {
    %c0_i32 = arith.constant 0 : i32
    %c0_i32_0 = arith.constant 0 : i32
    %c0_i32_1 = arith.constant 0 : i32
    return %c0_i32, %c0_i32_0 : i32, i32
  }
}

</mosaic_0001>

<llo_original>
// kernel: tpu_custom_call.1
$region0: #{tpu_custom_call.1}
  #allocation0 [shape = 'u32[]', space=smem, size = 0x4, offset = 0x4, fixed_abs, tag = 'smem constant byte address 0x4 - core index']
  #allocation1 [shape = 'u32[72,128]{1,0:T(1,128)}', space=vmem, size = 0x9000, scoped, tag = 'internal scratch']
  %s0 = inlined_call_operand.vmem [shape: f32[64,32], index: 0, kind: input, shape index: {}]
  %s1 = inlined_call_operand.vmem [shape: f32[32,32], index: 1, kind: input, shape index: {}]
  %s2 = inlined_call_operand.vmem [shape: f32[1,32], index: 2, kind: input, shape index: {}]
  %s3 = inlined_call_operand.vmem [shape: f32[32,32], index: 3, kind: input, shape index: {}]
  %s4 = inlined_call_operand.vmem [shape: f32[1,32], index: 4, kind: input, shape index: {}]
  %s5 = inlined_call_operand.vmem [shape: f32[64,32], index: 5, kind: output, shape index: {}]
  %s6 = sld [smem:[#allocation0]]
  $region30: #{tpu_custom_call.1} parent=0
    _
  %s8 = ssub.s32 1, %s6
  %s9 = scalar_select 0, %s8, %s6
  // Predicated region
  $region2: #{tpu_custom_call.1} parent=0 // pred_check
    _
  $region3: #{tpu_custom_call.1} parent=0 // pred_check_branch
    %11 = sbr.rel (0) target = $region5
  $region4: #{tpu_custom_call.1} parent=0 // pred_region
    _
  $region5: #{tpu_custom_call.1} parent=0 // pred_fallthru
    _
  // Predicated region
  $region6: #{tpu_custom_call.1} parent=0 // pred_check
    _
  $region7: #{tpu_custom_call.1} parent=0 // pred_check_branch
    %13 = sbr.rel (0) target = $region9
  $region8: #{tpu_custom_call.1} parent=0 // pred_region
    _
  $region9: #{tpu_custom_call.1} parent=0 // pred_fallthru
    _
  // Predicated region
  $region10: #{tpu_custom_call.1} parent=0 // pred_check
    _
  $region11: #{tpu_custom_call.1} parent=0 // pred_check_branch
    %15 = sbr.rel (0) target = $region13
  $region12: #{tpu_custom_call.1} parent=0 // pred_region
    _
  $region13: #{tpu_custom_call.1} parent=0 // pred_fallthru
    _
  // Predicated region
  $region14: #{tpu_custom_call.1} parent=0 // pred_check
    _
  $region15: #{tpu_custom_call.1} parent=0 // pred_check_branch
    %17 = sbr.rel (0) target = $region17
  $region16: #{tpu_custom_call.1} parent=0 // pred_region
    _
  $region17: #{tpu_custom_call.1} parent=0 // pred_fallthru
    _
  // Predicated region
  $region18: #{tpu_custom_call.1} parent=0 // pred_check
    _
  $region19: #{tpu_custom_call.1} parent=0 // pred_check_branch
    %19 = sbr.rel (0) target = $region21
  $region20: #{tpu_custom_call.1} parent=0 // pred_region
    _
  $region21: #{tpu_custom_call.1} parent=0 // pred_fallthru
    _
  %v20 = vld [vmem:[%s0] sm:$0xff]
  %v21 = vld [vmem:[%s0 + $0x8] sm:$0xff]
  %v22 = vld [vmem:[%s0 + $0x10] sm:$0xff]
  %v23 = vld [vmem:[%s0 + $0x18] sm:$0xff]
  %v24 = vld [vmem:[%s0 + $0x20] sm:$0xff]
  %v25 = vld [vmem:[%s0 + $0x28] sm:$0xff]
  %v26 = vld [vmem:[%s0 + $0x30] sm:$0xff]
  %v27 = vld [vmem:[%s0 + $0x38] sm:$0xff]
  %v28 = vld [vmem:[%s1] sm:$0xff]
  %v29 = vld [vmem:[%s1 + $0x8] sm:$0xff]
  %v30 = vld [vmem:[%s1 + $0x10] sm:$0xff]
  %v31 = vld [vmem:[%s1 + $0x18] sm:$0xff]
  %v32 = vld [vmem:[%s2] sm:$0x1]
  %v34 = vperm.slane %v32, 0
  %vm36 = vcmask 261120
  %v38 = vsel %vm36, %v20, 0
  %v41 = vsel %vm36, %v21, 0
  %v44 = vsel %vm36, %v22, 0
  %v47 = vsel %vm36, %v23, 0
  %v50 = vsel %vm36, %v24, 0
  %v53 = vsel %vm36, %v25, 0
  %v56 = vsel %vm36, %v26, 0
  %v59 = vsel %vm36, %v27, 0
  %61 = vmatpush.msra.mxu0 0.0
  %62 = vmatpush.msra.mxu0 0.0
  %63 = vmatpush.msra.mxu0 0.0
  %64 = vmatpush.msra.mxu0 0.0
  %65 = vmatpush.msra.mxu0 0.0
  %66 = vmatpush.msra.mxu0 0.0
  %67 = vmatpush.msra.mxu0 0.0
  %68 = vmatpush.msra.mxu0 0.0
  %69 = vmatpush.msra.mxu0 0.0
  %70 = vmatpush.msra.mxu0 0.0
  %71 = vmatpush.msra.mxu0 0.0
  %72 = vmatpush.msra.mxu0 0.0
  %73 = vmatpush.msra.mxu0 %v31
  %74 = vmatpush.msra.mxu0 %v30
  %75 = vmatpush.msra.mxu0 %v29
  %76 = vmatpush.msra.mxu0 %v28
  %77 = vmatmul.f32.gmra.mxu0 %v38
  %v78 = vpop.f32.mrf.mxu0
  %v79 = vadd.f32 %v34, %v78
  %80 = vmatmul.f32.gmra.mxu0 %v41
  %v81 = vpop.f32.mrf.mxu0
  %v82 = vadd.f32 %v34, %v81
  %83 = vmatmul.f32.gmra.mxu0 %v44
  %v84 = vpop.f32.mrf.mxu0
  %v85 = vadd.f32 %v34, %v84
  %86 = vmatmul.f32.gmra.mxu0 %v47
  %v87 = vpop.f32.mrf.mxu0
  %v88 = vadd.f32 %v34, %v87
  %89 = vmatmul.f32.gmra.mxu0 %v50
  %v90 = vpop.f32.mrf.mxu0
  %v91 = vadd.f32 %v34, %v90
  %92 = vmatmul.f32.gmra.mxu0 %v53
  %v93 = vpop.f32.mrf.mxu0
  %v94 = vadd.f32 %v34, %v93
  %95 = vmatmul.f32.gmra.mxu0 %v56
  %v96 = vpop.f32.mrf.mxu0
  %v97 = vadd.f32 %v34, %v96
  %98 = vmatmul.f32.gmra.mxu0 %v59
  %v99 = vpop.f32.mrf.mxu0
  %v100 = vadd.f32 %v34, %v99
  %101 = vdwg.mxu0
  %v102 = vxor.u32 %v79, 2147483648
  %v103 = vxor.u32 %v82, 2147483648
  %v104 = vxor.u32 %v85, 2147483648
  %v105 = vxor.u32 %v88, 2147483648
  %v106 = vxor.u32 %v91, 2147483648
  %v107 = vxor.u32 %v94, 2147483648
  %v108 = vxor.u32 %v97, 2147483648
  %v109 = vxor.u32 %v100, 2147483648
  %v110 = vmul.f32 %v102, 1.442695
  %v111 = vpow.pop %v110
  %v112 = vmul.f32 %v103, 1.442695
  %v113 = vpow.pop %v112
  %v114 = vmul.f32 %v104, 1.442695
  %v115 = vpow.pop %v114
  %v116 = vmul.f32 %v105, 1.442695
  %v117 = vpow.pop %v116
  %v118 = vmul.f32 %v106, 1.442695
  %v119 = vpow.pop %v118
  %v120 = vmul.f32 %v107, 1.442695
  %v121 = vpow.pop %v120
  %v122 = vmul.f32 %v108, 1.442695
  %v123 = vpow.pop %v122
  %v124 = vmul.f32 %v109, 1.442695
  %v125 = vpow.pop %v124
  %v126 = vadd.f32 %v111, 1.0
  %v127 = vadd.f32 %v113, 1.0
  %v128 = vadd.f32 %v115, 1.0
  %v129 = vadd.f32 %v117, 1.0
  %v130 = vadd.f32 %v119, 1.0
  %v131 = vadd.f32 %v121, 1.0
  %v132 = vadd.f32 %v123, 1.0
  %v133 = vadd.f32 %v125, 1.0
  %v134 = vrcp.pop %v126
  %v135 = vmul.f32 %v126, %v134
  %v136 = vsub.f32 1.0, %v135
  %v137 = vmul.f32 %v134, %v136
  %v138 = vadd.f32 %v134, %v137
  %vm139 = vweird.f32 %v126
  %vm140 = vweird.f32 %v134
  %vm141 = vmor %vm139, %vm140
  %v142 = vsel %vm141, %v134, %v138
  %v143 = vand.u32 2147483647, %v126
  %vm144 = vcmp.eq.f32.partialorder %v143, 8.507059e+37
  %v145 = vand.u32 %v126, 2147483648
  %v146 = vor.u32 1.1754944e-38, %v145
  %v147 = vsel %vm144, %v146, %v142
  %v148 = vmul.f32 1.0, %v147
  %v149 = vrcp.pop %v127
  %v150 = vmul.f32 %v127, %v149
  %v151 = vsub.f32 1.0, %v150
  %v152 = vmul.f32 %v149, %v151
  %v153 = vadd.f32 %v149, %v152
  %vm154 = vweird.f32 %v127
  %vm155 = vweird.f32 %v149
  %vm156 = vmor %vm154, %vm155
  %v157 = vsel %vm156, %v149, %v153
  %v158 = vand.u32 2147483647, %v127
  %vm159 = vcmp.eq.f32.partialorder %v158, 8.507059e+37
  %v160 = vand.u32 %v127, 2147483648
  %v161 = vor.u32 1.1754944e-38, %v160
  %v162 = vsel %vm159, %v161, %v157
  %v163 = vmul.f32 1.0, %v162
  %v164 = vrcp.pop %v128
  %v165 = vmul.f32 %v128, %v164
  %v166 = vsub.f32 1.0, %v165
  %v167 = vmul.f32 %v164, %v166
  %v168 = vadd.f32 %v164, %v167
  %vm169 = vweird.f32 %v128
  %vm170 = vweird.f32 %v164
  %vm171 = vmor %vm169, %vm170
  %v172 = vsel %vm171, %v164, %v168
  %v173 = vand.u32 2147483647, %v128
  %vm174 = vcmp.eq.f32.partialorder %v173, 8.507059e+37
  %v175 = vand.u32 %v128, 2147483648
  %v176 = vor.u32 1.1754944e-38, %v175
  %v177 = vsel %vm174, %v176, %v172
  %v178 = vmul.f32 1.0, %v177
  %v179 = vrcp.pop %v129
  %v180 = vmul.f32 %v129, %v179
  %v181 = vsub.f32 1.0, %v180
  %v182 = vmul.f32 %v179, %v181
  %v183 = vadd.f32 %v179, %v182
  %vm184 = vweird.f32 %v129
  %vm185 = vweird.f32 %v179
  %vm186 = vmor %vm184, %vm185
  %v187 = vsel %vm186, %v179, %v183
  %v188 = vand.u32 2147483647, %v129
  %vm189 = vcmp.eq.f32.partialorder %v188, 8.507059e+37
  %v190 = vand.u32 %v129, 2147483648
  %v191 = vor.u32 1.1754944e-38, %v190
  %v192 = vsel %vm189, %v191, %v187
  %v193 = vmul.f32 1.0, %v192
  %v194 = vrcp.pop %v130
  %v195 = vmul.f32 %v130, %v194
  %v196 = vsub.f32 1.0, %v195
  %v197 = vmul.f32 %v194, %v196
  %v198 = vadd.f32 %v194, %v197
  %vm199 = vweird.f32 %v130
  %vm200 = vweird.f32 %v194
  %vm201 = vmor %vm199, %vm200
  %v202 = vsel %vm201, %v194, %v198
  %v203 = vand.u32 2147483647, %v130
  %vm204 = vcmp.eq.f32.partialorder %v203, 8.507059e+37
  %v205 = vand.u32 %v130, 2147483648
  %v206 = vor.u32 1.1754944e-38, %v205
  %v207 = vsel %vm204, %v206, %v202
  %v208 = vmul.f32 1.0, %v207
  %v209 = vrcp.pop %v131
  %v210 = vmul.f32 %v131, %v209
  %v211 = vsub.f32 1.0, %v210
  %v212 = vmul.f32 %v209, %v211
  %v213 = vadd.f32 %v209, %v212
  %vm214 = vweird.f32 %v131
  %vm215 = vweird.f32 %v209
  %vm216 = vmor %vm214, %vm215
  %v217 = vsel %vm216, %v209, %v213
  %v218 = vand.u32 2147483647, %v131
  %vm219 = vcmp.eq.f32.partialorder %v218, 8.507059e+37
  %v220 = vand.u32 %v131, 2147483648
  %v221 = vor.u32 1.1754944e-38, %v220
  %v222 = vsel %vm219, %v221, %v217
  %v223 = vmul.f32 1.0, %v222
  %v224 = vrcp.pop %v132
  %v225 = vmul.f32 %v132, %v224
  %v226 = vsub.f32 1.0, %v225
  %v227 = vmul.f32 %v224, %v226
  %v228 = vadd.f32 %v224, %v227
  %vm229 = vweird.f32 %v132
  %vm230 = vweird.f32 %v224
  %vm231 = vmor %vm229, %vm230
  %v232 = vsel %vm231, %v224, %v228
  %v233 = vand.u32 2147483647, %v132
  %vm234 = vcmp.eq.f32.partialorder %v233, 8.507059e+37
  %v235 = vand.u32 %v132, 2147483648
  %v236 = vor.u32 1.1754944e-38, %v235
  %v237 = vsel %vm234, %v236, %v232
  %v238 = vmul.f32 1.0, %v237
  %v239 = vrcp.pop %v133
  %v240 = vmul.f32 %v133, %v239
  %v241 = vsub.f32 1.0, %v240
  %v242 = vmul.f32 %v239, %v241
  %v243 = vadd.f32 %v239, %v242
  %vm244 = vweird.f32 %v133
  %vm245 = vweird.f32 %v239
  %vm246 = vmor %vm244, %vm245
  %v247 = vsel %vm246, %v239, %v243
  %v248 = vand.u32 2147483647, %v133
  %vm249 = vcmp.eq.f32.partialorder %v248, 8.507059e+37
  %v250 = vand.u32 %v133, 2147483648
  %v251 = vor.u32 1.1754944e-38, %v250
  %v252 = vsel %vm249, %v251, %v247
  %v253 = vmul.f32 1.0, %v252
  %v254 = vmul.f32 %v79, %v148
  %v255 = vmul.f32 %v82, %v163
  %v256 = vmul.f32 %v85, %v178
  %v257 = vmul.f32 %v88, %v193
  %v258 = vmul.f32 %v91, %v208
  %v259 = vmul.f32 %v94, %v223
  %v260 = vmul.f32 %v97, %v238
  %v261 = vmul.f32 %v100, %v253
  %v262 = vld [vmem:[%s3] sm:$0xff]
  %v263 = vld [vmem:[%s3 + $0x8] sm:$0xff]
  %v264 = vld [vmem:[%s3 + $0x10] sm:$0xff]
  %v265 = vld [vmem:[%s3 + $0x18] sm:$0xff]
  %v266 = vld [vmem:[%s4] sm:$0x1]
  %v268 = vperm.slane %v266, 0
  %v271 = vsel %vm36, %v254, 0
  %v274 = vsel %vm36, %v255, 0
  %v277 = vsel %vm36, %v256, 0
  %v280 = vsel %vm36, %v257, 0
  %v283 = vsel %vm36, %v258, 0
  %v286 = vsel %vm36, %v259, 0
  %v289 = vsel %vm36, %v260, 0
  %v292 = vsel %vm36, %v261, 0
  %294 = vmatpush.msra.mxu0 0.0
  %295 = vmatpush.msra.mxu0 0.0
  %296 = vmatpush.msra.mxu0 0.0
  %297 = vmatpush.msra.mxu0 0.0
  %298 = vmatpush.msra.mxu0 0.0
  %299 = vmatpush.msra.mxu0 0.0
  %300 = vmatpush.msra.mxu0 0.0
  %301 = vmatpush.msra.mxu0 0.0
  %302 = vmatpush.msra.mxu0 0.0
  %303 = vmatpush.msra.mxu0 0.0
  %304 = vmatpush.msra.mxu0 0.0
  %305 = vmatpush.msra.mxu0 0.0
  %306 = vmatpush.msra.mxu0 %v265
  %307 = vmatpush.msra.mxu0 %v264
  %308 = vmatpush.msra.mxu0 %v263
  %309 = vmatpush.msra.mxu0 %v262
  %310 = vmatmul.f32.gmra.mxu0 %v271
  %v311 = vpop.f32.mrf.mxu0
  %v312 = vadd.f32 %v268, %v311
  %313 = vmatmul.f32.gmra.mxu0 %v274
  %v314 = vpop.f32.mrf.mxu0
  %v315 = vadd.f32 %v268, %v314
  %316 = vmatmul.f32.gmra.mxu0 %v277
  %v317 = vpop.f32.mrf.mxu0
  %v318 = vadd.f32 %v268, %v317
  %319 = vmatmul.f32.gmra.mxu0 %v280
  %v320 = vpop.f32.mrf.mxu0
  %v321 = vadd.f32 %v268, %v320
  %322 = vmatmul.f32.gmra.mxu0 %v283
  %v323 = vpop.f32.mrf.mxu0
  %v324 = vadd.f32 %v268, %v323
  %325 = vmatmul.f32.gmra.mxu0 %v286
  %v326 = vpop.f32.mrf.mxu0
  %v327 = vadd.f32 %v268, %v326
  %328 = vmatmul.f32.gmra.mxu0 %v289
  %v329 = vpop.f32.mrf.mxu0
  %v330 = vadd.f32 %v268, %v329
  %331 = vmatmul.f32.gmra.mxu0 %v292
  %v332 = vpop.f32.mrf.mxu0
  %v333 = vadd.f32 %v268, %v332
  %334 = vdwg.mxu0
  %335 = vst.msk [vmem:[%s5] sm:$0xff] %vm36, %v312
  %336 = vst.msk [vmem:[%s5 + $0x8] sm:$0xff] %vm36, %v315
  %337 = vst.msk [vmem:[%s5 + $0x10] sm:$0xff] %vm36, %v318
  %338 = vst.msk [vmem:[%s5 + $0x18] sm:$0xff] %vm36, %v321
  %339 = vst.msk [vmem:[%s5 + $0x20] sm:$0xff] %vm36, %v324
  %340 = vst.msk [vmem:[%s5 + $0x28] sm:$0xff] %vm36, %v327
  %341 = vst.msk [vmem:[%s5 + $0x30] sm:$0xff] %vm36, %v330
  %342 = vst.msk [vmem:[%s5 + $0x38] sm:$0xff] %vm36, %v333
  // Predicated region
  $region22: #{tpu_custom_call.1} parent=0 // pred_check
    _
  $region23: #{tpu_custom_call.1} parent=0 // pred_check_branch
    %344 = sbr.rel (0) target = $region25
  $region24: #{tpu_custom_call.1} parent=0 // pred_region
    _
  $region25: #{tpu_custom_call.1} parent=0 // pred_fallthru
    _
  // Predicated region
  $region26: #{tpu_custom_call.1} parent=0 // pred_check
    _
  $region27: #{tpu_custom_call.1} parent=0 // pred_check_branch
    %346 = sbr.rel (0) target = $region29
  $region28: #{tpu_custom_call.1} parent=0 // pred_region
    _
  $region29: #{tpu_custom_call.1} parent=0 // pred_fallthru
    _

</llo_original>
